<compile_context>
chip_gen: v7x
topology: tpu7x:2x2x1
jax: 0.10.0
libtpu: 0.0.40
codegen_flags: <defaults>
</compile_context>

<pallas_src>
import math

import jax
import jax.numpy as jnp
from jax.experimental import pallas as pl
from jax.experimental.pallas import tpu as pltpu

SMEM = pltpu.MemorySpace.SMEM


def _round_up(x, m):
    return ((x + m - 1) // m) * m


def _pick_tile_m(M, pref, mult):
    """Tile for the M axis that minimizes over-padding (multiple of `mult`)."""
    pref = max(pref, mult)
    if M <= pref:
        return _round_up(M, mult)
    n_tiles = -(-M // pref)                       # ceil
    return _round_up(-(-M // n_tiles), mult)


def _pick_tile_div(Dp, pref):
    """Largest multiple of 128 that divides Dp (itself a 128-multiple) and is <= pref."""
    pref = max(pref, 128)
    t = min((pref // 128) * 128, Dp)
    while Dp % t != 0:
        t -= 128
    return t


# ----------------------------------------------------------------------------
# Pallas kernels: tiled  y = scale * (x @ W^T) + b    (W^T cached as (K, N))
# ----------------------------------------------------------------------------
def _sigma_dense_kernel_inplace(x_ref, w_ref, b_ref, scale_ref, o_ref):
    # f32 output: accumulate directly into the resident output block (no scratch needed,
    # its block index ignores the K grid axis).
    k = pl.program_id(2)

    @pl.when(k == 0)
    def _():
        o_ref[...] = jnp.zeros_like(o_ref)

    o_ref[...] += jnp.dot(x_ref[...], w_ref[...], preferred_element_type=jnp.float32)

    @pl.when(k == pl.num_programs(2) - 1)
    def _():
        o_ref[...] = scale_ref[0, 0] * o_ref[...] + b_ref[...]


def _sigma_dense_kernel_acc(x_ref, w_ref, b_ref, scale_ref, o_ref, acc_ref):
    # sub-32-bit output: accumulate in an f32 VMEM scratch, cast on the final write.
    k = pl.program_id(2)

    @pl.when(k == 0)
    def _():
        acc_ref[...] = jnp.zeros_like(acc_ref)

    acc_ref[...] += jnp.dot(x_ref[...], w_ref[...], preferred_element_type=jnp.float32)

    @pl.when(k == pl.num_programs(2) - 1)
    def _():
        o_ref[...] = (scale_ref[0, 0] * acc_ref[...] + b_ref[...]).astype(o_ref.dtype)


# ----------------------------------------------------------------------------
# One-time parameter preparation (cache): pad / cast / transpose W, fold gamma/sigma
# ----------------------------------------------------------------------------
def prepare_sigma_reparam(params, *, compute_dtype=jnp.float32):
    W = params["W"]                      # (d_out, d_in), torch nn.Linear layout
    b = params["b"]
    u, v, gamma = params["u"], params["v"], params["gamma"]

    # Eval-mode sigma/scale do not depend on x -> compute once here (single HBM pass over W).
    # TODO(synk): training-mode power-iteration update of u/v is stateful host-side bookkeeping;
    # re-run prepare_sigma_reparam after each u/v/W update instead of doing it per forward.
    sigma = jnp.einsum("d,dc,c->", u, W, v)
    scale = (gamma[0] / sigma).astype(jnp.float32).reshape(1, 1)

    N, K = W.shape
    Np, Kp = _round_up(N, 128), _round_up(K, 128)
    compute_dtype = jnp.dtype(compute_dtype)

    wt = W.T.astype(compute_dtype)                         # (K, N): minor-dim contraction layout
    if (Kp, Np) != (K, N):
        wt = jnp.zeros((Kp, Np), compute_dtype).at[:K, :N].set(wt)

    bp = jnp.zeros((1, Np), jnp.float32)
    if b is not None:
        bp = bp.at[0, :N].set(b.astype(jnp.float32))

    return dict(wt=wt, bp=bp, scale=scale, N=N, K=K, Np=Np, Kp=Kp,
                compute_dtype=compute_dtype)


# ----------------------------------------------------------------------------
# Forward wrapper
# ----------------------------------------------------------------------------
def sigma_reparam_forward(x, prepared, *, out_dtype=jnp.float32,
                          tm_pref=256, tn_pref=256, tk_pref=None):
    """out = (gamma / (u^T W v)) * (x @ W.T) + b, using the cached `prepared` weights."""
    wt, bp, scale = prepared["wt"], prepared["bp"], prepared["scale"]
    N, K, Np, Kp = prepared["N"], prepared["K"], prepared["Np"], prepared["Kp"]
    compute_dtype = prepared["compute_dtype"]
    out_dtype = jnp.dtype(out_dtype)

    in_bytes = compute_dtype.itemsize
    out_bytes = out_dtype.itemsize
    sub32_in = in_bytes < 4
    if tk_pref is None:
        tk_pref = 1024 if sub32_in else 512

    orig_shape = x.shape
    assert orig_shape[-1] == K, (orig_shape, K)
    M = math.prod(orig_shape[:-1])

    # Tile selection: lane-dense (128-multiple) N/K tiles, minimal M over-padding.
    m_mult = 16 if (sub32_in or out_bytes < 4) else 8
    tm = _pick_tile_m(M, tm_pref, m_mult)
    Mp = _round_up(M, tm)
    tn = _pick_tile_div(Np, tn_pref)
    tk = _pick_tile_div(Kp, tk_pref)

    # v7x has 2 TensorCores: make sure at least one "parallel" axis has >= 2 grid steps.
    if Mp // tm == 1 and Np // tn == 1 and Np >= 256:
        tn = Np // 2 if (Np // 2) % 128 == 0 else 128

    # Pad / cast x only when actually required (common transformer case: no pad, cast only).
    x2 = x.reshape(M, K)
    if (Mp, Kp) != (M, K):
        xp = jnp.zeros((Mp, Kp), compute_dtype).at[:M, :K].set(x2.astype(compute_dtype))
    else:
        xp = x2.astype(compute_dtype)          # no-op if dtype already matches

    use_acc = out_dtype != jnp.float32
    kernel = _sigma_dense_kernel_acc if use_acc else _sigma_dense_kernel_inplace
    scratch_shapes = [pltpu.VMEM((tm, tn), jnp.float32)] if use_acc else []

    grid = (Mp // tm, Np // tn, Kp // tk)

    # VMEM limit derived from the actual tile footprint (double-buffered inputs + outputs + acc).
    footprint = (2 * (tm * tk + tk * tn) * in_bytes
                 + 2 * tn * 4
                 + 2 * tm * tn * out_bytes
                 + (tm * tn * 4 if use_acc else 0))
    vmem_limit = int(max(2 * footprint + (4 << 20), 32 << 20))

    out = pl.pallas_call(
        kernel,
        out_shape=jax.ShapeDtypeStruct((Mp, Np), out_dtype),
        grid=grid,
        in_specs=[
            pl.BlockSpec((tm, tk), lambda i, j, k: (i, k)),   # x tile
            pl.BlockSpec((tk, tn), lambda i, j, k: (k, j)),   # W^T tile, (K, N) layout
            pl.BlockSpec((1, tn), lambda i, j, k: (0, j)),    # bias tile
            pl.BlockSpec(memory_space=SMEM),                  # gamma / sigma scalar
        ],
        out_specs=pl.BlockSpec((tm, tn), lambda i, j, k: (i, j)),
        scratch_shapes=scratch_shapes,
        compiler_params=pltpu.CompilerParams(
            dimension_semantics=("parallel", "parallel", "arbitrary"),
            vmem_limit_bytes=vmem_limit,
        ),
        cost_estimate=pl.CostEstimate(
            flops=2 * Mp * Np * Kp,
            transcendentals=0,
            bytes_accessed=(Mp * Kp * in_bytes * (Np // tn)       # x re-reads
                            + Kp * Np * in_bytes * (Mp // tm)      # W re-reads
                            + Mp * Np * out_bytes),
        ),
    )(xp, wt, bp, scale)

    if (Mp, Np) != (M, N):
        out = out[:M, :N]
    return out.reshape(orig_shape[:-1] + (N,))


# ----------------------------------------------------------------------------
# Pure-JAX reference and deterministic init (mirrors the PyTorch module)
# ----------------------------------------------------------------------------
def sigma_reparam_reference(x, params):
    sigma = jnp.einsum("d,dc,c->", params["u"], params["W"], params["v"])
    W_hat = params["gamma"][0] / sigma * params["W"]
    y = jnp.einsum("...k,nk->...n", x, W_hat)
    if params["b"] is not None:
        y = y + params["b"]
    return y


def init_sigma_reparam(key, d_in, d_out, bias=True):
    kW, kb, ku, kv = jax.random.split(key, 4)
    bound = 1.0 / math.sqrt(d_in)                 # kaiming_uniform(a=sqrt(5)) bound
    W = jax.random.uniform(kW, (d_out, d_in), jnp.float32, -bound, bound)
    b = (jax.random.uniform(kb, (d_out,), jnp.float32, -bound, bound) if bias else None)
    u = jax.random.normal(ku, (d_out,), jnp.float32)
    u = u / jnp.linalg.norm(u)
    v = jax.random.normal(kv, (d_in,), jnp.float32)
    v = v / jnp.linalg.norm(v)
    gamma = jnp.ones((1,), jnp.float32)
    return dict(W=W, b=b, u=u, v=v, gamma=gamma)


def _max_rel_err(a, b):
    return float(jnp.max(jnp.abs(a - b)) / (jnp.max(jnp.abs(b)) + 1e-6))


# ----------------------------------------------------------------------------
if __name__ == "__main__":
    key = jax.random.PRNGKey(0)
    k1, k2, kx1, kx2 = jax.random.split(key, 4)

    B, L = 2, 16

    # --- shape 1: small / unaligned (exercises K and N padding) ----------------------------
    d_in, d_out = 32, 48
    params = init_sigma_reparam(k1, d_in, d_out, bias=True)
    x = jax.random.normal(kx1, (B, L, d_in), jnp.float32)
    ref = sigma_reparam_reference(x, params)

    prep_f32 = prepare_sigma_reparam(params, compute_dtype=jnp.float32)
    out = jax.block_until_ready(sigma_reparam_forward(x, prep_f32))
    assert out.shape == (B, L, d_out), out.shape
    assert bool(jnp.all(jnp.isfinite(out)))
    assert _max_rel_err(out, ref) < 2e-2, _max_rel_err(out, ref)

    # bf16 MXU-input fast path (f32 accumulation + f32 epilogue), usable on v5e/v6e/v7x.
    prep_bf16 = prepare_sigma_reparam(params, compute_dtype=jnp.bfloat16)
    out_bf = jax.block_until_ready(sigma_reparam_forward(x, prep_bf16))
    assert out_bf.shape == (B, L, d_out)
    assert bool(jnp.all(jnp.isfinite(out_bf)))
    assert _max_rel_err(out_bf, ref) < 6e-2, _max_rel_err(out_bf, ref)

    # --- shape 2: lane-aligned (no pads), Np=256 -> exercises the >=2-tile N split and the
    # bf16-output accumulator-scratch kernel ------------------------------------------------
    d_in2, d_out2 = 128, 256
    params2 = init_sigma_reparam(k2, d_in2, d_out2, bias=True)
    x2 = jax.random.normal(kx2, (B, L, d_in2), jnp.float32)
    ref2 = sigma_reparam_reference(x2, params2)

    prep2 = prepare_sigma_reparam(params2, compute_dtype=jnp.float32)
    out2 = jax.block_until_ready(
        sigma_reparam_forward(x2, prep2, out_dtype=jnp.bfloat16))
    assert out2.shape == (B, L, d_out2)
    assert out2.dtype == jnp.bfloat16
    assert _max_rel_err(out2.astype(jnp.float32), ref2) < 6e-2, \
        _max_rel_err(out2.astype(jnp.float32), ref2)

    print("KERNEL_OK")
</pallas_src>

<mosaic_0001>
module attributes {stable_mosaic.version = 11 : i64} {
  func.func @_sigma_dense_kernel_inplace(%arg0: i32, %arg1: i32, %arg2: i32, %arg3: memref<32x128xf32, #tpu.memory_space<vmem>>, %arg4: memref<128x128xf32, #tpu.memory_space<vmem>>, %arg5: memref<1x128xf32, #tpu.memory_space<vmem>>, %arg6: memref<1x1xf32, #tpu.memory_space<smem>>, %arg7: memref<32x128xf32, #tpu.memory_space<vmem>>) attributes {dimension_semantics = [#tpu.dimension_semantics<parallel>, #tpu.dimension_semantics<parallel>, #tpu.dimension_semantics<arbitrary>], iteration_bounds = array<i64: 1, 1, 1>, scalar_prefetch = 0 : i64, scratch_operands = 0 : i64, tpu.core_type = #tpu.core_type<tc>, window_params = [{transform_indices = @transform_0, window_bounds = array<i64: 32, 128>}, {transform_indices = @transform_1, window_bounds = array<i64: 128, 128>}, {transform_indices = @transform_2, window_bounds = array<i64: 1, 128>}, {transform_indices = @transform_3, window_bounds = array<i64: 1, 1>}, {transform_indices = @transform_4, window_bounds = array<i64: 32, 128>}]} {
    %c0_i32 = arith.constant 0 : i32
    %0 = arith.cmpi eq, %arg2, %c0_i32 : i32
    %1 = arith.extui %0 : i1 to i32
    %c0_i32_0 = arith.constant 0 : i32
    %2 = arith.cmpi ne, %1, %c0_i32_0 : i32
    scf.if %2 {
      %cst_10 = arith.constant 0.000000e+00 : f32
      %12 = vector.broadcast %cst_10 : f32 to vector<32x128xf32>
      %c0_11 = arith.constant 0 : index
      %c0_12 = arith.constant 0 : index
      %13 = vector.load %arg7[%c0_11, %c0_12] : memref<32x128xf32, #tpu.memory_space<vmem>>, vector<32x128xf32>
      tpu.vector_store %arg7[%c0_11, %c0_12], %12 {strides = array<i32>} : memref<32x128xf32, #tpu.memory_space<vmem>>, vector<32x128xf32>,
    } else {
    }
    %c0 = arith.constant 0 : index
    %c0_1 = arith.constant 0 : index
    %3 = vector.load %arg7[%c0, %c0_1] : memref<32x128xf32, #tpu.memory_space<vmem>>, vector<32x128xf32>
    %c0_2 = arith.constant 0 : index
    %c0_3 = arith.constant 0 : index
    %4 = vector.load %arg3[%c0_2, %c0_3] : memref<32x128xf32, #tpu.memory_space<vmem>>, vector<32x128xf32>
    %c0_4 = arith.constant 0 : index
    %c0_5 = arith.constant 0 : index
    %5 = vector.load %arg4[%c0_4, %c0_5] : memref<128x128xf32, #tpu.memory_space<vmem>>, vector<128x128xf32>
    %cst = arith.constant dense<0.000000e+00> : vector<32x128xf32>
    %6 = tpu.matmul %4, %5, %cst {dimension_numbers = #tpu.dot_dimension_numbers<[1], [0], [0], [1], [0, 0, 1, 1], [], []>} : vector<32x128xf32>, vector<128x128xf32>, vector<32x128xf32> -> vector<32x128xf32>
    %7 = arith.addf %3, %6 : vector<32x128xf32>
    %c0_6 = arith.constant 0 : index
    %c0_7 = arith.constant 0 : index
    %8 = vector.load %arg7[%c0_6, %c0_7] : memref<32x128xf32, #tpu.memory_space<vmem>>, vector<32x128xf32>
    tpu.vector_store %arg7[%c0_6, %c0_7], %7 {strides = array<i32>} : memref<32x128xf32, #tpu.memory_space<vmem>>, vector<32x128xf32>,
    %c0_i32_8 = arith.constant 0 : i32
    %9 = arith.cmpi eq, %arg2, %c0_i32_8 : i32
    %10 = arith.extui %9 : i1 to i32
    %c0_i32_9 = arith.constant 0 : i32
    %11 = arith.cmpi ne, %10, %c0_i32_9 : i32
    scf.if %11 {
      %c0_10 = arith.constant 0 : index
      %c0_11 = arith.constant 0 : index
      %12 = memref.load %arg6[%c0_10, %c0_11] : memref<1x1xf32, #tpu.memory_space<smem>>
      %c0_12 = arith.constant 0 : index
      %c0_13 = arith.constant 0 : index
      %13 = vector.load %arg7[%c0_12, %c0_13] : memref<32x128xf32, #tpu.memory_space<vmem>>, vector<32x128xf32>
      %14 = vector.broadcast %12 : f32 to vector<32x128xf32>
      %15 = arith.mulf %14, %13 : vector<32x128xf32>
      %c0_14 = arith.constant 0 : index
      %c0_15 = arith.constant 0 : index
      %16 = vector.load %arg5[%c0_14, %c0_15] : memref<1x128xf32, #tpu.memory_space<vmem>>, vector<1x128xf32>
      %17 = vector.broadcast %16 : vector<1x128xf32> to vector<32x128xf32>
      %18 = arith.addf %15, %17 : vector<32x128xf32>
      %c0_16 = arith.constant 0 : index
      %c0_17 = arith.constant 0 : index
      %19 = vector.load %arg7[%c0_16, %c0_17] : memref<32x128xf32, #tpu.memory_space<vmem>>, vector<32x128xf32>
      tpu.vector_store %arg7[%c0_16, %c0_17], %18 {strides = array<i32>} : memref<32x128xf32, #tpu.memory_space<vmem>>, vector<32x128xf32>,
    } else {
    }
    return
  }
  func.func @transform_0(%arg0: i32, %arg1: i32, %arg2: i32) -> (i32, i32) {
    %c0_i32 = arith.constant 0 : i32
    return %arg0, %arg2 : i32, i32
  }
  func.func @transform_1(%arg0: i32, %arg1: i32, %arg2: i32) -> (i32, i32) {
    %c0_i32 = arith.constant 0 : i32
    return %arg2, %arg1 : i32, i32
  }
  func.func @transform_2(%arg0: i32, %arg1: i32, %arg2: i32) -> (i32, i32) {
    %c0_i32 = arith.constant 0 : i32
    %c0_i32_0 = arith.constant 0 : i32
    return %c0_i32, %arg1 : i32, i32
  }
  func.func @transform_3(%arg0: i32, %arg1: i32, %arg2: i32) -> (i32, i32) {
    %c0_i32 = arith.constant 0 : i32
    %c0_i32_0 = arith.constant 0 : i32
    %c0_i32_1 = arith.constant 0 : i32
    return %c0_i32, %c0_i32_0 : i32, i32
  }
  func.func @transform_4(%arg0: i32, %arg1: i32, %arg2: i32) -> (i32, i32) {
    %c0_i32 = arith.constant 0 : i32
    return %arg0, %arg1 : i32, i32
  }
}

</mosaic_0001>

<llo_original>
// kernel: tpu_custom_call.1
$region0: #{tpu_custom_call.1}
  #allocation0 [shape = 'u32[]', space=smem, size = 0x4, offset = 0x4, fixed_abs, tag = 'smem constant byte address 0x4 - core index']
  #allocation1 [shape = 'u32[144,128]{1,0:T(1,128)}', space=vmem, size = 0x12000, scoped, tag = 'internal scratch']
  #allocation2 [shape = 'f32[1,1]{1,0:T(1,128)S(6)}', space=smem, size = 0x200, scoped, tag = 'scoped memory for tpu_custom_call.1']
  %s0 = inlined_call_operand.hbm [shape: f32[32,128], index: 0, kind: input, shape index: {}]
  %s1 = inlined_call_operand.hbm [shape: f32[128,128], index: 1, kind: input, shape index: {}]
  %s2 = inlined_call_operand.vmem [shape: f32[1,128], index: 2, kind: input, shape index: {}]
  %s3 = inlined_call_operand.<no memory space> [shape: f32[1,1], index: 3, kind: input, shape index: {}]
  %s4 = inlined_call_operand.hbm [shape: f32[32,128], index: 4, kind: output, shape index: {}]
  %s5 = sld [smem:[#allocation0]]
  $region42: #{tpu_custom_call.1} parent=0
    _
  %s7 = ssub.s32 1, %s5
  %s8 = scalar_select 0, %s7, %s5
  %9 = sst [smem:[#allocation2]] %s3
  $region1: #{tpu_custom_call.1} parent=0
    #allocation3 [shape = 'u8[16384]{0}', space=vmem, size = 0x4000, scoped, tag = 'input window, operand 0, single buffered']
    #allocation4 [shape = 's32[1]{0}', space=sflag, size = 0x4, scoped, tag = 'scoped memory for tpu_custom_call.1']
    #allocation5 [shape = 's32[1]{0}', space=sflag, size = 0x4, scoped, tag = 'scoped memory for tpu_custom_call.1']
    #allocation6 [shape = 'u8[65536]{0}', space=vmem, size = 0x10000, scoped, tag = 'input window, operand 1, single buffered']
    #allocation7 [shape = 's32[1]{0}', space=sflag, size = 0x4, scoped, tag = 'scoped memory for tpu_custom_call.1']
    #allocation8 [shape = 'u8[16384]{0}', space=vmem, size = 0x4000, scoped, tag = 'output window, operand 0, single buffered']
    %10 = vsyncpa [#allocation4], 0
    %11 = vsyncpa [#allocation7], 0
    %12 = vsyncpa [#allocation5], 0
    // Predicated region
    $region2: #{tpu_custom_call.1} parent=1 // pred_check
      _
    $region3: #{tpu_custom_call.1} parent=1 // pred_check_branch
      %14 = sbr.rel (0) target = $region5
    $region4: #{tpu_custom_call.1} parent=1 // pred_region
      %s16 = ssub.s32 512, 512
      %17 = vsyncadd [#allocation4], %s16
      %s18 = sshll.u32 [#allocation3], 4
      %s19 = int_to_ptr.vmem [resolvable:$true] %s18
      %24 = dma.hbm_to_vmem [thread:$0]  %s0, 512, %s19, [#allocation4], 128, 128, 8
    $region5: #{tpu_custom_call.1} parent=1 // pred_fallthru
      _
    // Predicated region
    $region6: #{tpu_custom_call.1} parent=1 // pred_check
      _
    $region7: #{tpu_custom_call.1} parent=1 // pred_check_branch
      %26 = sbr.rel (0) target = $region9
    $region8: #{tpu_custom_call.1} parent=1 // pred_region
      %s28 = ssub.s32 2048, 2048
      %29 = vsyncadd [#allocation7], %s28
      %s30 = sshll.u32 [#allocation6], 4
      %s31 = int_to_ptr.vmem [resolvable:$true] %s30
      %36 = dma.hbm_to_vmem [thread:$0]  %s1, 2048, %s31, [#allocation7], 128, 128, 8
    $region9: #{tpu_custom_call.1} parent=1 // pred_fallthru
      _
    // Predicated region
    $region10: #{tpu_custom_call.1} parent=1 // pred_check
      _
    $region11: #{tpu_custom_call.1} parent=1 // pred_check_branch
      %38 = sbr.rel (0) target = $region13
    $region12: #{tpu_custom_call.1} parent=1 // pred_region
      _
    $region13: #{tpu_custom_call.1} parent=1 // pred_fallthru
      _
    // Predicated region
    $region14: #{tpu_custom_call.1} parent=1 // pred_check
      _
    $region15: #{tpu_custom_call.1} parent=1 // pred_check_branch
      %40 = sbr.rel (0) target = $region17
    $region16: #{tpu_custom_call.1} parent=1 // pred_region
      _
    $region17: #{tpu_custom_call.1} parent=1 // pred_fallthru
      _
    // Predicated region
    $region18: #{tpu_custom_call.1} parent=1 // pred_check
      _
    $region19: #{tpu_custom_call.1} parent=1 // pred_check_branch
      %42 = sbr.rel (0) target = $region21
    $region20: #{tpu_custom_call.1} parent=1 // pred_region
      %43 = dma.done [#allocation4], 512
    $region21: #{tpu_custom_call.1} parent=1 // pred_fallthru
      _
    // Predicated region
    $region22: #{tpu_custom_call.1} parent=1 // pred_check
      _
    $region23: #{tpu_custom_call.1} parent=1 // pred_check_branch
      %45 = sbr.rel (0) target = $region25
    $region24: #{tpu_custom_call.1} parent=1 // pred_region
      %46 = dma.done [#allocation7], 2048
    $region25: #{tpu_custom_call.1} parent=1 // pred_fallthru
      _
    %p47 = scmp.eq.s32.totalorder 0, 0
    // Predicated region
    $region26: #{tpu_custom_call.1} parent=1 // pred_check
      %p48 = pneg %p47
    $region27: #{tpu_custom_call.1} parent=1 // pred_check_branch
      %50 = sbr.rel (%p48) target = $region29
    $region28: #{tpu_custom_call.1} parent=1 // pred_region
      %51 = vst [vmem:[#allocation8] sm:$0xff] 0.0
      %52 = vst [vmem:[#allocation8 + $0x8] sm:$0xff] 0.0
      %53 = vst [vmem:[#allocation8 + $0x10] sm:$0xff] 0.0
      %54 = vst [vmem:[#allocation8 + $0x18] sm:$0xff] 0.0
    $region29: #{tpu_custom_call.1} parent=1 // pred_fallthru
      _
    %v55 = vld [vmem:[#allocation8] sm:$0xff]
    %v56 = vld [vmem:[#allocation8 + $0x8] sm:$0xff]
    %v57 = vld [vmem:[#allocation8 + $0x10] sm:$0xff]
    %v58 = vld [vmem:[#allocation8 + $0x18] sm:$0xff]
    %v59 = vld [vmem:[#allocation3] sm:$0xff]
    %v60 = vld [vmem:[#allocation3 + $0x8] sm:$0xff]
    %v61 = vld [vmem:[#allocation3 + $0x10] sm:$0xff]
    %v62 = vld [vmem:[#allocation3 + $0x18] sm:$0xff]
    %v63 = vld [vmem:[#allocation6] sm:$0xff]
    %v64 = vld [vmem:[#allocation6 + $0x8] sm:$0xff]
    %v65 = vld [vmem:[#allocation6 + $0x10] sm:$0xff]
    %v66 = vld [vmem:[#allocation6 + $0x18] sm:$0xff]
    %v67 = vld [vmem:[#allocation6 + $0x20] sm:$0xff]
    %v68 = vld [vmem:[#allocation6 + $0x28] sm:$0xff]
    %v69 = vld [vmem:[#allocation6 + $0x30] sm:$0xff]
    %v70 = vld [vmem:[#allocation6 + $0x38] sm:$0xff]
    %v71 = vld [vmem:[#allocation6 + $0x40] sm:$0xff]
    %v72 = vld [vmem:[#allocation6 + $0x48] sm:$0xff]
    %v73 = vld [vmem:[#allocation6 + $0x50] sm:$0xff]
    %v74 = vld [vmem:[#allocation6 + $0x58] sm:$0xff]
    %v75 = vld [vmem:[#allocation6 + $0x60] sm:$0xff]
    %v76 = vld [vmem:[#allocation6 + $0x68] sm:$0xff]
    %v77 = vld [vmem:[#allocation6 + $0x70] sm:$0xff]
    %v78 = vld [vmem:[#allocation6 + $0x78] sm:$0xff]
    %79 = vmatprep.subr.mxu0 0.0
    %80 = vmatpush1.msra.mxu0 %v63
    %81 = vmatprep.subr.mxu0 0.0
    %82 = vmatpush1.msra.mxu0 %v64
    %83 = vmatprep.subr.mxu0 0.0
    %84 = vmatpush1.msra.mxu0 %v65
    %85 = vmatprep.subr.mxu0 0.0
    %86 = vmatpush1.msra.mxu0 %v66
    %87 = vmatprep.subr.mxu0 0.0
    %88 = vmatpush1.msra.mxu0 %v67
    %89 = vmatprep.subr.mxu0 0.0
    %90 = vmatpush1.msra.mxu0 %v68
    %91 = vmatprep.subr.mxu0 0.0
    %92 = vmatpush1.msra.mxu0 %v69
    %93 = vmatprep.subr.mxu0 0.0
    %94 = vmatpush1.msra.mxu0 %v70
    %95 = vmatprep.subr.mxu0 0.0
    %96 = vmatpush1.msra.mxu0 %v71
    %97 = vmatprep.subr.mxu0 0.0
    %98 = vmatpush1.msra.mxu0 %v72
    %99 = vmatprep.subr.mxu0 0.0
    %100 = vmatpush1.msra.mxu0 %v73
    %101 = vmatprep.subr.mxu0 0.0
    %102 = vmatpush1.msra.mxu0 %v74
    %103 = vmatprep.subr.mxu0 0.0
    %104 = vmatpush1.msra.mxu0 %v75
    %105 = vmatprep.subr.mxu0 0.0
    %106 = vmatpush1.msra.mxu0 %v76
    %107 = vmatprep.subr.mxu0 0.0
    %108 = vmatpush1.msra.mxu0 %v77
    %109 = vmatprep.subr.mxu0 0.0
    %110 = vmatpush1.msra.mxu0 %v78
    %111 = vmatprep.subr.mxu0 0.0
    %112 = vmatpush1.msra.mxu0 0.0
    %113 = vmatprep.subr.mxu0 0.0
    %114 = vmatpush1.msra.mxu0 0.0
    %115 = vmatprep.subr.mxu0 0.0
    %116 = vmatpush1.msra.mxu0 0.0
    %117 = vmatprep.subr.mxu0 0.0
    %118 = vmatpush1.msra.mxu0 0.0
    %119 = vmatprep.subr.mxu0 0.0
    %120 = vmatpush1.msra.mxu0 0.0
    %121 = vmatprep.subr.mxu0 0.0
    %122 = vmatpush1.msra.mxu0 0.0
    %123 = vmatprep.subr.mxu0 0.0
    %124 = vmatpush1.msra.mxu0 0.0
    %125 = vmatprep.subr.mxu0 0.0
    %126 = vmatpush1.msra.mxu0 0.0
    %127 = vmatprep.subr.mxu0 0.0
    %128 = vmatpush1.msra.mxu0 0.0
    %129 = vmatprep.subr.mxu0 0.0
    %130 = vmatpush1.msra.mxu0 0.0
    %131 = vmatprep.subr.mxu0 0.0
    %132 = vmatpush1.msra.mxu0 0.0
    %133 = vmatprep.subr.mxu0 0.0
    %134 = vmatpush1.msra.mxu0 0.0
    %135 = vmatprep.subr.mxu0 0.0
    %136 = vmatpush1.msra.mxu0 0.0
    %137 = vmatprep.subr.mxu0 0.0
    %138 = vmatpush1.msra.mxu0 0.0
    %139 = vmatprep.subr.mxu0 0.0
    %140 = vmatpush1.msra.mxu0 0.0
    %141 = vmatprep.subr.mxu0 0.0
    %142 = vmatpush1.msra.mxu0 0.0
    %143 = vmatprep.mubr.f32.mxu0 0.0
    %144 = vmatmul.mubr.f32.gmra.mrb[0].mxu0 %v59
    %v145 = vpop.f32.mrb[0].mxu0
    %v146 = vadd.f32 0.0, %v145
    %v147 = vpop.f32.mrb[0].mxu0
    %148 = vmatprep.mubr.f32.mxu0 0.0
    %149 = vmatmul.mubr.f32.gmra.mrb[0].mxu0 %v60
    %v150 = vpop.f32.mrb[0].mxu0
    %v151 = vadd.f32 0.0, %v150
    %v152 = vpop.f32.mrb[0].mxu0
    %153 = vmatprep.mubr.f32.mxu0 0.0
    %154 = vmatmul.mubr.f32.gmra.mrb[0].mxu0 %v61
    %v155 = vpop.f32.mrb[0].mxu0
    %v156 = vadd.f32 0.0, %v155
    %v157 = vpop.f32.mrb[0].mxu0
    %158 = vmatprep.mubr.f32.mxu0 0.0
    %159 = vmatmul.mubr.f32.gmra.mrb[0].mxu0 %v62
    %v160 = vpop.f32.mrb[0].mxu0
    %v161 = vadd.f32 0.0, %v160
    %v162 = vpop.f32.mrb[0].mxu0
    %163 = vdwg.mxu0
    %v164 = vadd.f32 %v55, %v146
    %v165 = vadd.f32 %v56, %v151
    %v166 = vadd.f32 %v57, %v156
    %v167 = vadd.f32 %v58, %v161
    %168 = vst [vmem:[#allocation8] sm:$0xff] %v164
    %169 = vst [vmem:[#allocation8 + $0x8] sm:$0xff] %v165
    %170 = vst [vmem:[#allocation8 + $0x10] sm:$0xff] %v166
    %171 = vst [vmem:[#allocation8 + $0x18] sm:$0xff] %v167
    // Predicated region
    $region30: #{tpu_custom_call.1} parent=1 // pred_check
      %p172 = pneg %p47
    $region31: #{tpu_custom_call.1} parent=1 // pred_check_branch
      %174 = sbr.rel (%p172) target = $region33
    $region32: #{tpu_custom_call.1} parent=1 // pred_region
      %s175 = sld [smem:[#allocation2]]
      %v176 = vld [vmem:[#allocation8] sm:$0xff]
      %v177 = vld [vmem:[#allocation8 + $0x8] sm:$0xff]
      %v178 = vld [vmem:[#allocation8 + $0x10] sm:$0xff]
      %v179 = vld [vmem:[#allocation8 + $0x18] sm:$0xff]
      %v180 = vstv %s175
      %v181 = vmul.f32 %v180, %v176
      %v182 = vmul.f32 %v180, %v177
      %v183 = vmul.f32 %v180, %v178
      %v184 = vmul.f32 %v180, %v179
      %v185 = vld [vmem:[%s2] sm:$0x1]
      %v187 = vlaneseq
      %v188 = vshrl.u32 %v187, 7
      %v189 = vsub.s32 0, %v188
      %v190 = vrot.slane %v185, %v189
      %v192 = vadd.f32 %v181, %v190
      %v193 = vadd.f32 %v182, %v190
      %v194 = vadd.f32 %v183, %v190
      %v195 = vadd.f32 %v184, %v190
      %196 = vst [vmem:[#allocation8] sm:$0xff] %v192
      %197 = vst [vmem:[#allocation8 + $0x8] sm:$0xff] %v193
      %198 = vst [vmem:[#allocation8 + $0x10] sm:$0xff] %v194
      %199 = vst [vmem:[#allocation8 + $0x18] sm:$0xff] %v195
    $region33: #{tpu_custom_call.1} parent=1 // pred_fallthru
      _
    // Predicated region
    $region34: #{tpu_custom_call.1} parent=1 // pred_check
      _
    $region35: #{tpu_custom_call.1} parent=1 // pred_check_branch
      %201 = sbr.rel (0) target = $region37
    $region36: #{tpu_custom_call.1} parent=1 // pred_region
      %s203 = ssub.s32 512, 512
      %204 = vsyncadd [#allocation5], %s203
      %s205 = sshll.u32 [#allocation8], 4
      %s206 = int_to_ptr.vmem [resolvable:$true] %s205
      %211 = dma.vmem_to_hbm [thread:$0]  %s206, 512, %s4, [#allocation5], 128, 128, 8
    $region37: #{tpu_custom_call.1} parent=1 // pred_fallthru
      _
    // Predicated region
    $region38: #{tpu_custom_call.1} parent=1 // pred_check
      _
    $region39: #{tpu_custom_call.1} parent=1 // pred_check_branch
      %213 = sbr.rel (0) target = $region41
    $region40: #{tpu_custom_call.1} parent=1 // pred_region
      %214 = dma.done [#allocation5], 512
    $region41: #{tpu_custom_call.1} parent=1 // pred_fallthru
      _
    %215 = vsyncpa [#allocation4], 1
    %216 = vsyncpa [#allocation7], 1
    %217 = vsyncpa [#allocation5], 1

</llo_original>
